<compile_context>
chip_gen: v6e
topology: v6e:2x2x1
jax: 0.10.0
libtpu: 0.0.40
codegen_flags: <defaults>
</compile_context>

<pallas_src>
import math

import jax
import jax.numpy as jnp
from jax.experimental import pallas as pl
from jax.experimental.pallas import tpu as pltpu


def _round_up(x, m):
    return ((x + m - 1) // m) * m


# ---------------------------------------------------------------------------
# Preprocessing: edge_index -> dense normalized adjacency, built directly at
# the padded size and in the streaming dtype (bf16).
# ---------------------------------------------------------------------------
def build_norm_adj(edge_index, num_nodes, n_pad=None, dtype=jnp.bfloat16):
    if n_pad is None:
        n_pad = num_nodes
    src, dst = edge_index[0], edge_index[1]
    a = jnp.zeros((n_pad, n_pad), jnp.float32)
    # PyG GCNConv (flow='source_to_target') aggregates over incoming edges:
    # dense operator row = target, column = source.  `.add` keeps parallel-edge
    # multiplicity like PyG's scatter-add.
    a = a.at[dst, src].add(1.0)
    idx = jnp.arange(num_nodes)
    a = a.at[idx, idx].add(1.0)                    # add self loops
    deg = a.sum(axis=1)                            # padded rows stay 0
    dinv = jnp.where(deg > 0, jax.lax.rsqrt(deg), 0.0)
    return (a * dinv[:, None] * dinv[None, :]).astype(dtype)


# ---------------------------------------------------------------------------
# Tile selection (generation-aware defaults)
# ---------------------------------------------------------------------------
def _choose_tiles(n, max_tile_m=1024, max_tile_k=2048):
    n128 = _round_up(n, 128)
    if n128 <= max_tile_k:
        tile_k = n128
    else:
        # Largest power-of-two tile whose zero-padding overhead stays small
        # (padding would be streamed as real HBM bytes).
        tile_k = 128
        t = 256
        while t <= max_tile_k:
            if _round_up(n128, t) <= n128 + n128 // 8:
                tile_k = t
            t *= 2
    if tile_k >= 256:
        # >= 2 row blocks per column block so v7x's two TensorCores both work.
        tile_m = min(max_tile_m, tile_k // 2)
    else:
        tile_m = tile_k
    n_pad = _round_up(n, tile_k)
    return tile_m, tile_k, n_pad


# ---------------------------------------------------------------------------
# Kernel 1: folded per-node feature transform  H0 = X @ (W1 @ W2)
# ---------------------------------------------------------------------------
def _feat_transform_kernel(x_ref, w_ref, out_ref):
    out_ref[...] = jnp.dot(
        x_ref[...], w_ref[...], preferred_element_type=jnp.float32
    ).astype(out_ref.dtype)


# ---------------------------------------------------------------------------
# Kernel 2: propagation  Out = A_hat @ H0 + b12
# ---------------------------------------------------------------------------
def _make_prop_kernel(tile_k, resident_h0):
    def kernel(adj_ref, h0_ref, b_ref, out_ref, acc_ref):
        k = pl.program_id(1)

        @pl.when(k == 0)
        def _():
            acc_ref[...] = jnp.zeros_like(acc_ref)

        if resident_h0:
            start = pl.multiple_of(k * tile_k, tile_k)
            h0_blk = h0_ref[pl.ds(start, tile_k), :]
        else:
            h0_blk = h0_ref[...]

        acc_ref[...] += jnp.dot(
            adj_ref[...], h0_blk, preferred_element_type=jnp.float32
        )

        @pl.when(k == pl.num_programs(1) - 1)
        def _():
            out_ref[...] = (acc_ref[...] + b_ref[...]).astype(out_ref.dtype)

    return kernel


# ---------------------------------------------------------------------------
# Wrapper
# ---------------------------------------------------------------------------
def gcn_forward(x, edge_index, w1, b1, w2, b2):
    n, nfeat = x.shape
    nclass = w2.shape[1]
    c_pad = _round_up(nclass, 128)                 # lane-dense output blocks

    tile_m, tile_k, n_pad = _choose_tiles(n)

    # Fold fc into GCNConv (no activation in between, pure host-side algebra).
    w12 = w1.astype(jnp.float32) @ w2.astype(jnp.float32)
    b12 = b1.astype(jnp.float32) @ w2.astype(jnp.float32) + b2.astype(jnp.float32)
    w12p = jnp.zeros((nfeat, c_pad), jnp.float32).at[:, :nclass].set(w12)
    b12p = jnp.zeros((1, c_pad), jnp.float32).at[:, :nclass].set(b12)

    x = x.astype(jnp.float32)
    if n_pad != n:
        x = jnp.pad(x, ((0, n_pad - n), (0, 0)))   # tiny [n, nfeat] pad only

    # Dense normalized adjacency, built already padded, streamed in bf16.
    adj = build_norm_adj(edge_index, n, n_pad, dtype=jnp.bfloat16)

    # --- stage 1: H0 = X @ W12, emitted in bf16 ---------------------------
    h0 = pl.pallas_call(
        _feat_transform_kernel,
        out_shape=jax.ShapeDtypeStruct((n_pad, c_pad), jnp.bfloat16),
        grid=(n_pad // tile_m,),
        in_specs=[
            pl.BlockSpec((tile_m, nfeat), lambda i: (i, 0)),
            pl.BlockSpec((nfeat, c_pad), lambda i: (0, 0)),
        ],
        out_specs=pl.BlockSpec((tile_m, c_pad), lambda i: (i, 0)),
        compiler_params=pltpu.CompilerParams(
            dimension_semantics=("parallel",),
        ),
    )(x, w12p)

    # --- stage 2: Out = A_hat @ H0 + b12 -----------------------------------
    # Keep H0 fully VMEM-resident when small enough (kills its per-row-tile
    # HBM re-read); otherwise stream the (tile_k, c_pad) K-slab per step.
    resident_h0 = (n_pad * c_pad * 2 * 2) <= (8 << 20)   # bf16, x2 buffering
    if resident_h0:
        h0_spec = pl.BlockSpec((n_pad, c_pad), lambda i, k: (0, 0))
    else:
        h0_spec = pl.BlockSpec((tile_k, c_pad), lambda i, k: (k, 0))

    out = pl.pallas_call(
        _make_prop_kernel(tile_k, resident_h0),
        out_shape=jax.ShapeDtypeStruct((n_pad, c_pad), jnp.float32),
        grid=(n_pad // tile_m, n_pad // tile_k),
        in_specs=[
            pl.BlockSpec((tile_m, tile_k), lambda i, k: (i, k)),   # A_hat tile
            h0_spec,                                               # H0
            pl.BlockSpec((1, c_pad), lambda i, k: (0, 0)),         # b12
        ],
        out_specs=pl.BlockSpec((tile_m, c_pad), lambda i, k: (i, 0)),
        scratch_shapes=[pltpu.VMEM((tile_m, c_pad), jnp.float32)],
        compiler_params=pltpu.CompilerParams(
            dimension_semantics=("parallel", "arbitrary"),
            vmem_limit_bytes=32 * 1024 * 1024,
        ),
    )(adj, h0, b12p)

    return out[:n, :nclass]


# ---------------------------------------------------------------------------
# Module port
# ---------------------------------------------------------------------------
def _glorot(key, shape):
    fan_in, fan_out = shape
    limit = math.sqrt(6.0 / (fan_in + fan_out))
    return jax.random.uniform(key, shape, jnp.float32, -limit, limit)


class GCNPallas:
    """JAX/Pallas port of EDITS.GCN: GCNConv(nfeat->nhid) followed by Linear."""

    def __init__(self, nfeat, nhid, nclass, dropout=0.5, *, key=None):
        if key is None:
            key = jax.random.PRNGKey(0)
        k1, k2 = jax.random.split(key)
        # GCNConv weight: glorot init, bias zero (PyG default).
        self.w1 = _glorot(k1, (nfeat, nhid))
        self.b1 = jnp.zeros((nhid,), jnp.float32)
        # fc: xavier_uniform weight, zero bias (GCN.weights_init).
        self.w2 = _glorot(k2, (nhid, nclass))
        self.b2 = jnp.zeros((nclass,), jnp.float32)
        self.dropout = dropout  # not applied in reference forward

    def forward(self, x, edge_index):
        return gcn_forward(x, edge_index, self.w1, self.b1, self.w2, self.b2)


# ---------------------------------------------------------------------------
# Pure-JAX f32 reference (unfolded, matching the original module formula)
# ---------------------------------------------------------------------------
def _reference_forward(x, edge_index, w1, b1, w2, b2):
    n = x.shape[0]
    src, dst = edge_index[0], edge_index[1]
    a = jnp.zeros((n, n), jnp.float32).at[dst, src].add(1.0)
    idx = jnp.arange(n)
    a = a.at[idx, idx].add(1.0)
    deg = a.sum(axis=1)
    dinv = jnp.where(deg > 0, jax.lax.rsqrt(deg), 0.0)
    a_hat = a * dinv[:, None] * dinv[None, :]
    return (a_hat @ (x @ w1) + b1) @ w2 + b2


if __name__ == "__main__":
    # Small deterministic graph: 128 nodes, 32 features, 64 hidden, 16 classes.
    n, nfeat, nhid, nclass = 128, 32, 64, 16
    key = jax.random.PRNGKey(0)
    kx, ke1, ke2, km = jax.random.split(key, 4)

    x = jax.random.normal(kx, (n, nfeat), jnp.float32)
    num_edges = 512
    src = jax.random.randint(ke1, (num_edges,), 0, n)
    dst = jax.random.randint(ke2, (num_edges,), 0, n)
    edge_index = jnp.stack([src, dst])

    model = GCNPallas(nfeat, nhid, nclass, dropout=0.5, key=km)
    out = jax.block_until_ready(model.forward(x, edge_index))

    ref = _reference_forward(x, edge_index, model.w1, model.b1, model.w2, model.b2)

    assert out.shape == (n, nclass), out.shape
    assert out.dtype == jnp.float32, out.dtype
    # bf16 adjacency / H0 stream + W-folding reassociation -> loosened tolerance.
    err = float(jnp.max(jnp.abs(out - ref)))
    assert err < 2e-2, err
    print("KERNEL_OK")
</pallas_src>

<mosaic_0001>
module attributes {stable_mosaic.version = 11 : i64} {
  func.func @_feat_transform_kernel(%arg0: i32, %arg1: memref<128x32xf32, #tpu.memory_space<vmem>>, %arg2: memref<32x128xf32, #tpu.memory_space<vmem>>, %arg3: memref<128x128xbf16, #tpu.memory_space<vmem>>) attributes {dimension_semantics = [#tpu.dimension_semantics<parallel>], iteration_bounds = array<i64: 1>, scalar_prefetch = 0 : i64, scratch_operands = 0 : i64, tpu.core_type = #tpu.core_type<tc>, window_params = [{transform_indices = @transform_0, window_bounds = array<i64: 128, 32>}, {pipeline_mode = #tpu.pipeline_mode<synchronous>, transform_indices = @transform_1, window_bounds = array<i64: 32, 128>}, {transform_indices = @transform_2, window_bounds = array<i64: 128, 128>}]} {
    %c0 = arith.constant 0 : index
    %c0_0 = arith.constant 0 : index
    %0 = vector.load %arg1[%c0, %c0_0] : memref<128x32xf32, #tpu.memory_space<vmem>>, vector<128x32xf32>
    %c0_1 = arith.constant 0 : index
    %c0_2 = arith.constant 0 : index
    %1 = vector.load %arg2[%c0_1, %c0_2] : memref<32x128xf32, #tpu.memory_space<vmem>>, vector<32x128xf32>
    %cst = arith.constant dense<0.000000e+00> : vector<128x128xf32>
    %2 = tpu.matmul %0, %1, %cst {dimension_numbers = #tpu.dot_dimension_numbers<[1], [0], [0], [1], [0, 0, 1, 1], [], []>} : vector<128x32xf32>, vector<32x128xf32>, vector<128x128xf32> -> vector<128x128xf32>
    %3 = arith.truncf %2 : vector<128x128xf32> to vector<128x128xbf16>
    %c0_3 = arith.constant 0 : index
    %c0_4 = arith.constant 0 : index
    %4 = vector.load %arg3[%c0_3, %c0_4] : memref<128x128xbf16, #tpu.memory_space<vmem>>, vector<128x128xbf16>
    tpu.vector_store %arg3[%c0_3, %c0_4], %3 {strides = array<i32>} : memref<128x128xbf16, #tpu.memory_space<vmem>>, vector<128x128xbf16>,
    return
  }
  func.func @transform_0(%arg0: i32) -> (i32, i32) {
    %c0_i32 = arith.constant 0 : i32
    %c0_i32_0 = arith.constant 0 : i32
    return %arg0, %c0_i32 : i32, i32
  }
  func.func @transform_1(%arg0: i32) -> (i32, i32) {
    %c0_i32 = arith.constant 0 : i32
    %c0_i32_0 = arith.constant 0 : i32
    %c0_i32_1 = arith.constant 0 : i32
    return %c0_i32, %c0_i32_0 : i32, i32
  }
  func.func @transform_2(%arg0: i32) -> (i32, i32) {
    %c0_i32 = arith.constant 0 : i32
    %c0_i32_0 = arith.constant 0 : i32
    return %arg0, %c0_i32 : i32, i32
  }
}

</mosaic_0001>

<llo_original>
// kernel: tpu_custom_call.1
$region0: #{tpu_custom_call.1}
  #allocation0 [shape = 'u32[]', space=smem, size = 0x4, offset = 0x4, fixed_abs, tag = 'smem constant byte address 0x4 - core index']
  #allocation1 [shape = 'u32[144,128]{1,0:T(1,128)}', space=vmem, size = 0x12000, scoped, tag = 'internal scratch']
  %s0 = inlined_call_operand.vmem [shape: f32[128,32], index: 0, kind: input, shape index: {}]
  %s1 = inlined_call_operand.vmem [shape: f32[32,128], index: 1, kind: input, shape index: {}]
  %s2 = inlined_call_operand.hbm [shape: bf16[128,128], index: 2, kind: output, shape index: {}]
  %s3 = sld [smem:[#allocation0]]
  $region18: #{tpu_custom_call.1} parent=0
    _
  %s5 = ssub.s32 1, %s3
  %s6 = scalar_select 0, %s5, %s3
  $region1: #{tpu_custom_call.1} parent=0
    #allocation2 [shape = 'u8[32768]{0}', space=vmem, size = 0x8000, scoped, tag = 'output window, operand 0, single buffered']
    #allocation3 [shape = 's32[1]{0}', space=sflag, size = 0x4, scoped, tag = 'scoped memory for tpu_custom_call.1']
    %7 = vsyncpa [#allocation3], 0
    // Predicated region
    $region2: #{tpu_custom_call.1} parent=1 // pred_check
      _
    $region3: #{tpu_custom_call.1} parent=1 // pred_check_branch
      %9 = sbr.rel (0) target = $region5
    $region4: #{tpu_custom_call.1} parent=1 // pred_region
      _
    $region5: #{tpu_custom_call.1} parent=1 // pred_fallthru
      _
    // Predicated region
    $region6: #{tpu_custom_call.1} parent=1 // pred_check
      _
    $region7: #{tpu_custom_call.1} parent=1 // pred_check_branch
      %11 = sbr.rel (0) target = $region9
    $region8: #{tpu_custom_call.1} parent=1 // pred_region
      _
    $region9: #{tpu_custom_call.1} parent=1 // pred_fallthru
      _
    %v12 = vld [vmem:[%s0] sm:$0xff]
    %v13 = vld [vmem:[%s0 + $0x8] sm:$0xff]
    %v14 = vld [vmem:[%s0 + $0x10] sm:$0xff]
    %v15 = vld [vmem:[%s0 + $0x18] sm:$0xff]
    %v16 = vld [vmem:[%s0 + $0x20] sm:$0xff]
    %v17 = vld [vmem:[%s0 + $0x28] sm:$0xff]
    %v18 = vld [vmem:[%s0 + $0x30] sm:$0xff]
    %v19 = vld [vmem:[%s0 + $0x38] sm:$0xff]
    %v20 = vld [vmem:[%s0 + $0x40] sm:$0xff]
    %v21 = vld [vmem:[%s0 + $0x48] sm:$0xff]
    %v22 = vld [vmem:[%s0 + $0x50] sm:$0xff]
    %v23 = vld [vmem:[%s0 + $0x58] sm:$0xff]
    %v24 = vld [vmem:[%s0 + $0x60] sm:$0xff]
    %v25 = vld [vmem:[%s0 + $0x68] sm:$0xff]
    %v26 = vld [vmem:[%s0 + $0x70] sm:$0xff]
    %v27 = vld [vmem:[%s0 + $0x78] sm:$0xff]
    %v28 = vld [vmem:[%s1] sm:$0xff]
    %v29 = vld [vmem:[%s1 + $0x8] sm:$0xff]
    %v30 = vld [vmem:[%s1 + $0x10] sm:$0xff]
    %v31 = vld [vmem:[%s1 + $0x18] sm:$0xff]
    %vm32 = vcmask 261120
    %v34 = vsel %vm32, %v12, 0
    %v37 = vsel %vm32, %v13, 0
    %v40 = vsel %vm32, %v14, 0
    %v43 = vsel %vm32, %v15, 0
    %v46 = vsel %vm32, %v16, 0
    %v49 = vsel %vm32, %v17, 0
    %v52 = vsel %vm32, %v18, 0
    %v55 = vsel %vm32, %v19, 0
    %v58 = vsel %vm32, %v20, 0
    %v61 = vsel %vm32, %v21, 0
    %v64 = vsel %vm32, %v22, 0
    %v67 = vsel %vm32, %v23, 0
    %v70 = vsel %vm32, %v24, 0
    %v73 = vsel %vm32, %v25, 0
    %v76 = vsel %vm32, %v26, 0
    %v79 = vsel %vm32, %v27, 0
    %81 = vmatprep.subr.mxu0 0.0
    %82 = vmatpush1.msra.mxu0 0.0
    %83 = vmatprep.subr.mxu0 0.0
    %84 = vmatpush1.msra.mxu0 0.0
    %85 = vmatprep.subr.mxu0 0.0
    %86 = vmatpush1.msra.mxu0 0.0
    %87 = vmatprep.subr.mxu0 0.0
    %88 = vmatpush1.msra.mxu0 0.0
    %89 = vmatprep.subr.mxu0 0.0
    %90 = vmatpush1.msra.mxu0 0.0
    %91 = vmatprep.subr.mxu0 0.0
    %92 = vmatpush1.msra.mxu0 0.0
    %93 = vmatprep.subr.mxu0 0.0
    %94 = vmatpush1.msra.mxu0 0.0
    %95 = vmatprep.subr.mxu0 0.0
    %96 = vmatpush1.msra.mxu0 0.0
    %97 = vmatprep.subr.mxu0 0.0
    %98 = vmatpush1.msra.mxu0 0.0
    %99 = vmatprep.subr.mxu0 0.0
    %100 = vmatpush1.msra.mxu0 0.0
    %101 = vmatprep.subr.mxu0 0.0
    %102 = vmatpush1.msra.mxu0 0.0
    %103 = vmatprep.subr.mxu0 0.0
    %104 = vmatpush1.msra.mxu0 0.0
    %105 = vmatprep.subr.mxu0 0.0
    %106 = vmatpush1.msra.mxu0 %v31
    %107 = vmatprep.subr.mxu0 0.0
    %108 = vmatpush1.msra.mxu0 %v30
    %109 = vmatprep.subr.mxu0 0.0
    %110 = vmatpush1.msra.mxu0 %v29
    %111 = vmatprep.subr.mxu0 0.0
    %112 = vmatpush1.msra.mxu0 %v28
    %113 = vmatprep.subr.mxu0 0.0
    %114 = vmatpush2.msra.mxu0 0.0
    %115 = vmatprep.subr.mxu0 0.0
    %116 = vmatpush2.msra.mxu0 0.0
    %117 = vmatprep.subr.mxu0 0.0
    %118 = vmatpush2.msra.mxu0 0.0
    %119 = vmatprep.subr.mxu0 0.0
    %120 = vmatpush2.msra.mxu0 0.0
    %121 = vmatprep.subr.mxu0 0.0
    %122 = vmatpush2.msra.mxu0 0.0
    %123 = vmatprep.subr.mxu0 0.0
    %124 = vmatpush2.msra.mxu0 0.0
    %125 = vmatprep.subr.mxu0 0.0
    %126 = vmatpush2.msra.mxu0 0.0
    %127 = vmatprep.subr.mxu0 0.0
    %128 = vmatpush2.msra.mxu0 0.0
    %129 = vmatprep.subr.mxu0 0.0
    %130 = vmatpush2.msra.mxu0 0.0
    %131 = vmatprep.subr.mxu0 0.0
    %132 = vmatpush2.msra.mxu0 0.0
    %133 = vmatprep.subr.mxu0 0.0
    %134 = vmatpush2.msra.mxu0 0.0
    %135 = vmatprep.subr.mxu0 0.0
    %136 = vmatpush2.msra.mxu0 0.0
    %137 = vmatprep.subr.mxu0 0.0
    %138 = vmatpush2.msra.mxu0 0.0
    %139 = vmatprep.subr.mxu0 0.0
    %140 = vmatpush2.msra.mxu0 0.0
    %141 = vmatprep.subr.mxu0 0.0
    %142 = vmatpush2.msra.mxu0 0.0
    %143 = vmatprep.subr.mxu0 0.0
    %144 = vmatpush2.msra.mxu0 0.0
    %145 = vmatprep.mubr.f32.mxu0 0.0
    %146 = vmatmul.mubr.f32.gmra.mxu0 %v34
    %v147 = vpop.f32.mrf.mxu0
    %v148 = vadd.f32 0.0, %v147
    %v149 = vpop.f32.mrf.mxu0
    %150 = vmatprep.mubr.f32.mxu0 0.0
    %151 = vmatmul.mubr.f32.gmra.mxu0 %v37
    %v152 = vpop.f32.mrf.mxu0
    %v153 = vadd.f32 0.0, %v152
    %v154 = vpop.f32.mrf.mxu0
    %155 = vmatprep.mubr.f32.mxu0 0.0
    %156 = vmatmul.mubr.f32.gmra.mxu0 %v40
    %v157 = vpop.f32.mrf.mxu0
    %v158 = vadd.f32 0.0, %v157
    %v159 = vpop.f32.mrf.mxu0
    %160 = vmatprep.mubr.f32.mxu0 0.0
    %161 = vmatmul.mubr.f32.gmra.mxu0 %v43
    %v162 = vpop.f32.mrf.mxu0
    %v163 = vadd.f32 0.0, %v162
    %v164 = vpop.f32.mrf.mxu0
    %165 = vmatprep.mubr.f32.mxu0 0.0
    %166 = vmatmul.mubr.f32.gmra.mxu0 %v46
    %v167 = vpop.f32.mrf.mxu0
    %v168 = vadd.f32 0.0, %v167
    %v169 = vpop.f32.mrf.mxu0
    %170 = vmatprep.mubr.f32.mxu0 0.0
    %171 = vmatmul.mubr.f32.gmra.mxu0 %v49
    %v172 = vpop.f32.mrf.mxu0
    %v173 = vadd.f32 0.0, %v172
    %v174 = vpop.f32.mrf.mxu0
    %175 = vmatprep.mubr.f32.mxu0 0.0
    %176 = vmatmul.mubr.f32.gmra.mxu0 %v52
    %v177 = vpop.f32.mrf.mxu0
    %v178 = vadd.f32 0.0, %v177
    %v179 = vpop.f32.mrf.mxu0
    %180 = vmatprep.mubr.f32.mxu0 0.0
    %181 = vmatmul.mubr.f32.gmra.mxu0 %v55
    %v182 = vpop.f32.mrf.mxu0
    %v183 = vadd.f32 0.0, %v182
    %v184 = vpop.f32.mrf.mxu0
    %185 = vmatprep.mubr.f32.mxu0 0.0
    %186 = vmatmul.mubr.f32.gmra.mxu0 %v58
    %v187 = vpop.f32.mrf.mxu0
    %v188 = vadd.f32 0.0, %v187
    %v189 = vpop.f32.mrf.mxu0
    %190 = vmatprep.mubr.f32.mxu0 0.0
    %191 = vmatmul.mubr.f32.gmra.mxu0 %v61
    %v192 = vpop.f32.mrf.mxu0
    %v193 = vadd.f32 0.0, %v192
    %v194 = vpop.f32.mrf.mxu0
    %195 = vmatprep.mubr.f32.mxu0 0.0
    %196 = vmatmul.mubr.f32.gmra.mxu0 %v64
    %v197 = vpop.f32.mrf.mxu0
    %v198 = vadd.f32 0.0, %v197
    %v199 = vpop.f32.mrf.mxu0
    %200 = vmatprep.mubr.f32.mxu0 0.0
    %201 = vmatmul.mubr.f32.gmra.mxu0 %v67
    %v202 = vpop.f32.mrf.mxu0
    %v203 = vadd.f32 0.0, %v202
    %v204 = vpop.f32.mrf.mxu0
    %205 = vmatprep.mubr.f32.mxu0 0.0
    %206 = vmatmul.mubr.f32.gmra.mxu0 %v70
    %v207 = vpop.f32.mrf.mxu0
    %v208 = vadd.f32 0.0, %v207
    %v209 = vpop.f32.mrf.mxu0
    %210 = vmatprep.mubr.f32.mxu0 0.0
    %211 = vmatmul.mubr.f32.gmra.mxu0 %v73
    %v212 = vpop.f32.mrf.mxu0
    %v213 = vadd.f32 0.0, %v212
    %v214 = vpop.f32.mrf.mxu0
    %215 = vmatprep.mubr.f32.mxu0 0.0
    %216 = vmatmul.mubr.f32.gmra.mxu0 %v76
    %v217 = vpop.f32.mrf.mxu0
    %v218 = vadd.f32 0.0, %v217
    %v219 = vpop.f32.mrf.mxu0
    %220 = vmatprep.mubr.f32.mxu0 0.0
    %221 = vmatmul.mubr.f32.gmra.mxu0 %v79
    %v222 = vpop.f32.mrf.mxu0
    %v223 = vadd.f32 0.0, %v222
    %v224 = vpop.f32.mrf.mxu0
    %225 = vdwg.mxu0
    %v226 = vpack.c.bf16 %v153, %v148
    %v227 = vpack.c.bf16 %v163, %v158
    %v228 = vpack.c.bf16 %v173, %v168
    %v229 = vpack.c.bf16 %v183, %v178
    %v230 = vpack.c.bf16 %v193, %v188
    %v231 = vpack.c.bf16 %v203, %v198
    %v232 = vpack.c.bf16 %v213, %v208
    %v233 = vpack.c.bf16 %v223, %v218
    %v242 = vunpack.c.l.b16 %v226
    %v243 = vunpack.c.h.b16 %v226
    %v244 = vunpack.c.l.b16 %v227
    %v245 = vunpack.c.h.b16 %v227
    %v246 = vunpack.c.l.b16 %v228
    %v247 = vunpack.c.h.b16 %v228
    %v248 = vunpack.c.l.b16 %v229
    %v249 = vunpack.c.h.b16 %v229
    %v250 = vunpack.c.l.b16 %v230
    %v251 = vunpack.c.h.b16 %v230
    %v252 = vunpack.c.l.b16 %v231
    %v253 = vunpack.c.h.b16 %v231
    %v254 = vunpack.c.l.b16 %v232
    %v255 = vunpack.c.h.b16 %v232
    %v256 = vunpack.c.l.b16 %v233
    %v257 = vunpack.c.h.b16 %v233
    %v258 = vpack.c.b16 %v242, %v242
    %v259 = vpack.c.b16 %v243, %v243
    %v260 = vpack.c.b16 %v244, %v244
    %v261 = vpack.c.b16 %v245, %v245
    %v262 = vpack.c.b16 %v246, %v246
    %v263 = vpack.c.b16 %v247, %v247
    %v264 = vpack.c.b16 %v248, %v248
    %v265 = vpack.c.b16 %v249, %v249
    %v266 = vpack.c.b16 %v250, %v250
    %v267 = vpack.c.b16 %v251, %v251
    %v268 = vpack.c.b16 %v252, %v252
    %v269 = vpack.c.b16 %v253, %v253
    %v270 = vpack.c.b16 %v254, %v254
    %v271 = vpack.c.b16 %v255, %v255
    %v272 = vpack.c.b16 %v256, %v256
    %v273 = vpack.c.b16 %v257, %v257
    %290 = vst [vmem:[#allocation2] sm:$0xf] %v258
    %291 = vst [vmem:[#allocation2 + $0x4] sm:$0xf] %v259
    %292 = vst [vmem:[#allocation2 + $0x8] sm:$0xf] %v260
    %293 = vst [vmem:[#allocation2 + $0xc] sm:$0xf] %v261
    %294 = vst [vmem:[#allocation2 + $0x10] sm:$0xf] %v262
    %295 = vst [vmem:[#allocation2 + $0x14] sm:$0xf] %v263
    %296 = vst [vmem:[#allocation2 + $0x18] sm:$0xf] %v264
    %297 = vst [vmem:[#allocation2 + $0x1c] sm:$0xf] %v265
    %298 = vst [vmem:[#allocation2 + $0x20] sm:$0xf] %v266
    %299 = vst [vmem:[#allocation2 + $0x24] sm:$0xf] %v267
    %300 = vst [vmem:[#allocation2 + $0x28] sm:$0xf] %v268
    %301 = vst [vmem:[#allocation2 + $0x2c] sm:$0xf] %v269
    %302 = vst [vmem:[#allocation2 + $0x30] sm:$0xf] %v270
    %303 = vst [vmem:[#allocation2 + $0x34] sm:$0xf] %v271
    %304 = vst [vmem:[#allocation2 + $0x38] sm:$0xf] %v272
    %305 = vst [vmem:[#allocation2 + $0x3c] sm:$0xf] %v273
    // Predicated region
    $region10: #{tpu_custom_call.1} parent=1 // pred_check
      _
    $region11: #{tpu_custom_call.1} parent=1 // pred_check_branch
      %307 = sbr.rel (0) target = $region13
    $region12: #{tpu_custom_call.1} parent=1 // pred_region
      %s309 = ssub.s32 1024, 1024
      %310 = vsyncadd [#allocation3], %s309
      %s311 = sshll.u32 [#allocation2], 4
      %s312 = int_to_ptr.vmem [resolvable:$true] %s311
      %317 = dma.vmem_to_hbm [thread:$0]  %s312, 1024, %s2, [#allocation3], 64, 64, 4
    $region13: #{tpu_custom_call.1} parent=1 // pred_fallthru
      _
    // Predicated region
    $region14: #{tpu_custom_call.1} parent=1 // pred_check
      _
    $region15: #{tpu_custom_call.1} parent=1 // pred_check_branch
      %319 = sbr.rel (0) target = $region17
    $region16: #{tpu_custom_call.1} parent=1 // pred_region
      %320 = dma.done [#allocation3], 1024
    $region17: #{tpu_custom_call.1} parent=1 // pred_fallthru
      _
    %321 = vsyncpa [#allocation3], 1

</llo_original>
